<compile_context>
chip_gen: v7x
topology: tpu7x:2x2x1
jax: 0.10.0
libtpu: 0.0.40
codegen_flags: <defaults>
</compile_context>

<pallas_src>
import functools

import jax
import jax.numpy as jnp
from jax.experimental import pallas as pl
from jax.experimental.pallas import tpu as pltpu

_HID1, _HID2, _HID3 = 128, 256, 128


def _round_up(x, m):
    return ((x + m - 1) // m) * m


def _cdiv(a, b):
    return -(-a // b)


def _choose_tiling(B, tile_cap=2048):
    """Pick (batch_tile, n_steps).

    - n_steps is even and >= 2 so the two v7x TensorCores always get balanced
      work (on single-TC v5e/v6e the extra step costs ~0.35 us — negligible).
    - batch_tile only needs sublane (8) alignment on the M dim (K/N alignment
      is what the MXU cares about), so padding waste is tiny for awkward B.
    - tile_cap=2048 keeps the per-step live set (intermediates + single-
      buffered weights) well inside every generation's scoped-VMEM budget.
    """
    n_steps = max(2, 2 * _cdiv(B, 2 * tile_cap))
    tile = _round_up(_cdiv(B, n_steps), 8)
    return tile, n_steps


def mlp_kernel(x_ref,
               w1_ref, b1_ref,
               w2_ref, b2_ref,
               w3_ref, b3_ref,
               w4_ref, b4_ref,
               o_ref):
    # Matmul operands in the weights' dtype (bf16 by default), accumulate f32,
    # bias-add / ReLU on the f32 accumulator (VPU), cast down only for the MXU.
    mm_dtype = w1_ref.dtype

    # Layer 1: (tb, in) @ (in, 128) + (1, 128) -> ReLU
    h = jnp.dot(x_ref[...].astype(mm_dtype), w1_ref[...],
                preferred_element_type=jnp.float32)
    h = jnp.maximum(h + b1_ref[...], 0.0)
    # Layer 2: (tb, 128) @ (128, 256) + (1, 256) -> ReLU
    h = jnp.dot(h.astype(mm_dtype), w2_ref[...],
                preferred_element_type=jnp.float32)
    h = jnp.maximum(h + b2_ref[...], 0.0)
    # Layer 3: (tb, 256) @ (256, 128) + (1, 128) -> ReLU
    h = jnp.dot(h.astype(mm_dtype), w3_ref[...],
                preferred_element_type=jnp.float32)
    h = jnp.maximum(h + b3_ref[...], 0.0)
    # Layer 4 (no activation): (tb, 128) @ (128, out) + (1, out)
    out = jnp.dot(h.astype(mm_dtype), w4_ref[...],
                  preferred_element_type=jnp.float32)
    o_ref[...] = (out + b4_ref[...]).astype(o_ref.dtype)


@functools.partial(jax.jit, static_argnames=("batch_tile",))
def _mlp_pallas(x, w1, b1, w2, b2, w3, b3, w4, b4, *, batch_tile):
    B, input_dim = x.shape
    output_dim = w4.shape[1]
    grid = (B // batch_tile,)

    # Constant-index weights/biases: one resident VMEM copy, no second pipeline
    # buffer (their block index never changes across the grid).
    def const_spec(arr):
        return pl.BlockSpec(arr.shape, lambda i: (0,) * arr.ndim,
                            pipeline_mode=pl.Buffered(1))

    flops = 2 * B * (input_dim * _HID1 + _HID1 * _HID2 +
                     _HID2 * _HID3 + _HID3 * output_dim)
    weight_bytes = sum(int(a.size) * a.dtype.itemsize
                       for a in (w1, b1, w2, b2, w3, b3, w4, b4))
    bytes_accessed = (B * (input_dim + output_dim) * x.dtype.itemsize
                      + weight_bytes)

    return pl.pallas_call(
        mlp_kernel,
        out_shape=jax.ShapeDtypeStruct((B, output_dim), x.dtype),
        grid_spec=pltpu.PrefetchScalarGridSpec(
            num_scalar_prefetch=0,
            grid=grid,
            in_specs=[
                pl.BlockSpec((batch_tile, input_dim), lambda i: (i, 0)),
                const_spec(w1), const_spec(b1),
                const_spec(w2), const_spec(b2),
                const_spec(w3), const_spec(b3),
                const_spec(w4), const_spec(b4),
            ],
            out_specs=pl.BlockSpec((batch_tile, output_dim), lambda i: (i, 0)),
        ),
        compiler_params=pltpu.CompilerParams(
            dimension_semantics=("parallel",),   # shards batch across v7x TCs
            vmem_limit_bytes=32 << 20,           # headroom for tb=2048 tiles
        ),
        cost_estimate=pl.CostEstimate(flops=flops, transcendentals=0,
                                      bytes_accessed=bytes_accessed),
    )(x, w1, b1, w2, b2, w3, b3, w4, b4)


def mlp_combined_forward(x, params, *, use_bf16_matmul=True, batch_tile=None):
    """Runs the 4-layer MLP with a single fused Pallas kernel.

    x: (B, input_dim) float32, any B (padded internally to a tile multiple).
    params: dict with w1..w4 stored transposed as (in, out) and b1..b4 (1, out).
    use_bf16_matmul: cast matmul operands to bf16 (f32 accumulation). Set False
      for bit-faithful f32 matmuls.
    """
    B = x.shape[0]
    if batch_tile is None:
        batch_tile, n_steps = _choose_tiling(B)
    else:
        batch_tile = _round_up(batch_tile, 8)
        n_steps = _cdiv(B, batch_tile)
    B_pad = batch_tile * n_steps
    if B_pad != B:
        x = jnp.pad(x, ((0, B_pad - B), (0, 0)))

    mm_dtype = jnp.bfloat16 if use_bf16_matmul else x.dtype
    w1, w2, w3, w4 = (params[k].astype(mm_dtype) for k in ("w1", "w2", "w3", "w4"))
    b1, b2, b3, b4 = (params[k] for k in ("b1", "b2", "b3", "b4"))  # f32 biases

    out = _mlp_pallas(x, w1, b1, w2, b2, w3, b3, w4, b4,
                      batch_tile=batch_tile)
    return out[:B] if B_pad != B else out


def init_params(key, input_dim, output_dim):
    """Deterministic init mimicking nn.Linear's U(-1/sqrt(fan_in), 1/sqrt(fan_in)).

    Weights are stored transposed as (in_features, out_features) so the kernel
    computes y = x @ W + b (same math as PyTorch's x @ W.T + b).
    """
    dims = [(input_dim, _HID1), (_HID1, _HID2), (_HID2, _HID3),
            (_HID3, output_dim)]
    params = {}
    for idx, (fan_in, fan_out) in enumerate(dims, start=1):
        key, kw, kb = jax.random.split(key, 3)
        bound = 1.0 / (fan_in ** 0.5)
        params[f"w{idx}"] = jax.random.uniform(
            kw, (fan_in, fan_out), jnp.float32, minval=-bound, maxval=bound)
        params[f"b{idx}"] = jax.random.uniform(
            kb, (1, fan_out), jnp.float32, minval=-bound, maxval=bound)
    return params


def mlp_reference(x, params):
    """Pure-JAX f32 reference for correctness checking."""
    h = jnp.maximum(x @ params["w1"] + params["b1"], 0.0)
    h = jnp.maximum(h @ params["w2"] + params["b2"], 0.0)
    h = jnp.maximum(h @ params["w3"] + params["b3"], 0.0)
    return h @ params["w4"] + params["b4"]


if __name__ == "__main__":
    key = jax.random.PRNGKey(0)
    key, kx, kp = jax.random.split(key, 3)

    input_dim = 32
    output_dim = 16
    params = init_params(kp, input_dim, output_dim)

    # Small, non-divisible batch: exercises pad-and-slice + even >=2-step grid.
    x_small = jax.random.normal(kx, (10, input_dim), jnp.float32)
    ref_small = mlp_reference(x_small, params)

    # Exact-f32 path: tight tolerance against the f32 reference.
    out_f32 = jax.block_until_ready(
        mlp_combined_forward(x_small, params, use_bf16_matmul=False))
    assert out_f32.shape == (10, output_dim), out_f32.shape
    assert jnp.allclose(out_f32, ref_small, atol=1e-4, rtol=1e-4), \
        "mismatch vs reference (f32 path)"

    # Default bf16-matmul path: looser tolerance (bf16 operand mantissa).
    out_small = jax.block_until_ready(mlp_combined_forward(x_small, params))
    assert out_small.shape == (10, output_dim), out_small.shape
    assert jnp.allclose(out_small, ref_small, atol=3e-2, rtol=3e-2), \
        "mismatch vs reference (bf16 path, small batch)"

    # Larger, awkward batch (300 -> two 152-row tiles, minimal padding).
    key, kx2 = jax.random.split(key)
    x_big = jax.random.normal(kx2, (300, input_dim), jnp.float32)
    ref_big = mlp_reference(x_big, params)
    out_big = jax.block_until_ready(mlp_combined_forward(x_big, params))
    assert out_big.shape == (300, output_dim), out_big.shape
    assert jnp.allclose(out_big, ref_big, atol=3e-2, rtol=3e-2), \
        "mismatch vs reference (bf16 path, tiled batch)"

    print("KERNEL_OK")
</pallas_src>

<mosaic_0001>
module attributes {stable_mosaic.version = 11 : i64} {
  func.func @mlp_kernel(%arg0: i32, %arg1: memref<8x32xf32, #tpu.memory_space<vmem>>, %arg2: memref<32x128xf32, #tpu.memory_space<vmem>>, %arg3: memref<1x128xf32, #tpu.memory_space<vmem>>, %arg4: memref<128x256xf32, #tpu.memory_space<vmem>>, %arg5: memref<1x256xf32, #tpu.memory_space<vmem>>, %arg6: memref<256x128xf32, #tpu.memory_space<vmem>>, %arg7: memref<1x128xf32, #tpu.memory_space<vmem>>, %arg8: memref<128x16xf32, #tpu.memory_space<vmem>>, %arg9: memref<1x16xf32, #tpu.memory_space<vmem>>, %arg10: memref<8x16xf32, #tpu.memory_space<vmem>>) attributes {dimension_semantics = [#tpu.dimension_semantics<parallel>], iteration_bounds = array<i64: 2>, scalar_prefetch = 0 : i64, scratch_operands = 0 : i64, tpu.core_type = #tpu.core_type<tc>, window_params = [{transform_indices = @transform_0, window_bounds = array<i64: 8, 32>}, {pipeline_mode = #tpu.pipeline_mode<synchronous>, transform_indices = @transform_1, window_bounds = array<i64: 32, 128>}, {pipeline_mode = #tpu.pipeline_mode<synchronous>, transform_indices = @transform_2, window_bounds = array<i64: 1, 128>}, {pipeline_mode = #tpu.pipeline_mode<synchronous>, transform_indices = @transform_3, window_bounds = array<i64: 128, 256>}, {pipeline_mode = #tpu.pipeline_mode<synchronous>, transform_indices = @transform_4, window_bounds = array<i64: 1, 256>}, {pipeline_mode = #tpu.pipeline_mode<synchronous>, transform_indices = @transform_5, window_bounds = array<i64: 256, 128>}, {pipeline_mode = #tpu.pipeline_mode<synchronous>, transform_indices = @transform_6, window_bounds = array<i64: 1, 128>}, {pipeline_mode = #tpu.pipeline_mode<synchronous>, transform_indices = @transform_7, window_bounds = array<i64: 128, 16>}, {pipeline_mode = #tpu.pipeline_mode<synchronous>, transform_indices = @transform_8, window_bounds = array<i64: 1, 16>}, {transform_indices = @transform_9, window_bounds = array<i64: 8, 16>}]} {
    %c0 = arith.constant 0 : index
    %c0_0 = arith.constant 0 : index
    %0 = vector.load %arg1[%c0, %c0_0] : memref<8x32xf32, #tpu.memory_space<vmem>>, vector<8x32xf32>
    %c0_1 = arith.constant 0 : index
    %c0_2 = arith.constant 0 : index
    %1 = vector.load %arg2[%c0_1, %c0_2] : memref<32x128xf32, #tpu.memory_space<vmem>>, vector<32x128xf32>
    %cst = arith.constant dense<0.000000e+00> : vector<8x128xf32>
    %2 = tpu.matmul %0, %1, %cst {dimension_numbers = #tpu.dot_dimension_numbers<[1], [0], [0], [1], [0, 0, 1, 1], [], []>} : vector<8x32xf32>, vector<32x128xf32>, vector<8x128xf32> -> vector<8x128xf32>
    %c0_3 = arith.constant 0 : index
    %c0_4 = arith.constant 0 : index
    %3 = vector.load %arg3[%c0_3, %c0_4] : memref<1x128xf32, #tpu.memory_space<vmem>>, vector<1x128xf32>
    %4 = vector.broadcast %3 : vector<1x128xf32> to vector<8x128xf32>
    %5 = arith.addf %2, %4 : vector<8x128xf32>
    %cst_5 = arith.constant 0.000000e+00 : f32
    %6 = vector.broadcast %cst_5 : f32 to vector<8x128xf32>
    %7 = arith.maximumf %5, %6 : vector<8x128xf32>
    %c0_6 = arith.constant 0 : index
    %c0_7 = arith.constant 0 : index
    %8 = vector.load %arg4[%c0_6, %c0_7] : memref<128x256xf32, #tpu.memory_space<vmem>>, vector<128x256xf32>
    %cst_8 = arith.constant dense<0.000000e+00> : vector<8x256xf32>
    %9 = tpu.matmul %7, %8, %cst_8 {dimension_numbers = #tpu.dot_dimension_numbers<[1], [0], [0], [1], [0, 0, 1, 1], [], []>} : vector<8x128xf32>, vector<128x256xf32>, vector<8x256xf32> -> vector<8x256xf32>
    %c0_9 = arith.constant 0 : index
    %c0_10 = arith.constant 0 : index
    %10 = vector.load %arg5[%c0_9, %c0_10] : memref<1x256xf32, #tpu.memory_space<vmem>>, vector<1x256xf32>
    %11 = vector.broadcast %10 : vector<1x256xf32> to vector<8x256xf32>
    %12 = arith.addf %9, %11 : vector<8x256xf32>
    %cst_11 = arith.constant 0.000000e+00 : f32
    %13 = vector.broadcast %cst_11 : f32 to vector<8x256xf32>
    %14 = arith.maximumf %12, %13 : vector<8x256xf32>
    %c0_12 = arith.constant 0 : index
    %c0_13 = arith.constant 0 : index
    %15 = vector.load %arg6[%c0_12, %c0_13] : memref<256x128xf32, #tpu.memory_space<vmem>>, vector<256x128xf32>
    %cst_14 = arith.constant dense<0.000000e+00> : vector<8x128xf32>
    %16 = tpu.matmul %14, %15, %cst_14 {dimension_numbers = #tpu.dot_dimension_numbers<[1], [0], [0], [1], [0, 0, 1, 1], [], []>} : vector<8x256xf32>, vector<256x128xf32>, vector<8x128xf32> -> vector<8x128xf32>
    %c0_15 = arith.constant 0 : index
    %c0_16 = arith.constant 0 : index
    %17 = vector.load %arg7[%c0_15, %c0_16] : memref<1x128xf32, #tpu.memory_space<vmem>>, vector<1x128xf32>
    %18 = vector.broadcast %17 : vector<1x128xf32> to vector<8x128xf32>
    %19 = arith.addf %16, %18 : vector<8x128xf32>
    %cst_17 = arith.constant 0.000000e+00 : f32
    %20 = vector.broadcast %cst_17 : f32 to vector<8x128xf32>
    %21 = arith.maximumf %19, %20 : vector<8x128xf32>
    %c0_18 = arith.constant 0 : index
    %c0_19 = arith.constant 0 : index
    %22 = vector.load %arg8[%c0_18, %c0_19] : memref<128x16xf32, #tpu.memory_space<vmem>>, vector<128x16xf32>
    %cst_20 = arith.constant dense<0.000000e+00> : vector<8x16xf32>
    %23 = tpu.matmul %21, %22, %cst_20 {dimension_numbers = #tpu.dot_dimension_numbers<[1], [0], [0], [1], [0, 0, 1, 1], [], []>} : vector<8x128xf32>, vector<128x16xf32>, vector<8x16xf32> -> vector<8x16xf32>
    %c0_21 = arith.constant 0 : index
    %c0_22 = arith.constant 0 : index
    %24 = vector.load %arg9[%c0_21, %c0_22] : memref<1x16xf32, #tpu.memory_space<vmem>>, vector<1x16xf32>
    %25 = vector.broadcast %24 : vector<1x16xf32> to vector<8x16xf32>
    %26 = arith.addf %23, %25 : vector<8x16xf32>
    %c0_23 = arith.constant 0 : index
    %c0_24 = arith.constant 0 : index
    %27 = vector.load %arg10[%c0_23, %c0_24] : memref<8x16xf32, #tpu.memory_space<vmem>>, vector<8x16xf32>
    tpu.vector_store %arg10[%c0_23, %c0_24], %26 {strides = array<i32>} : memref<8x16xf32, #tpu.memory_space<vmem>>, vector<8x16xf32>,
    return
  }
  func.func @transform_0(%arg0: i32) -> (i32, i32) {
    %c0_i32 = arith.constant 0 : i32
    %c0_i32_0 = arith.constant 0 : i32
    return %arg0, %c0_i32 : i32, i32
  }
  func.func @transform_1(%arg0: i32) -> (i32, i32) {
    %c0_i32 = arith.constant 0 : i32
    %c0_i32_0 = arith.constant 0 : i32
    %c0_i32_1 = arith.constant 0 : i32
    return %c0_i32, %c0_i32_0 : i32, i32
  }
  func.func @transform_2(%arg0: i32) -> (i32, i32) {
    %c0_i32 = arith.constant 0 : i32
    %c0_i32_0 = arith.constant 0 : i32
    %c0_i32_1 = arith.constant 0 : i32
    return %c0_i32, %c0_i32_0 : i32, i32
  }
  func.func @transform_3(%arg0: i32) -> (i32, i32) {
    %c0_i32 = arith.constant 0 : i32
    %c0_i32_0 = arith.constant 0 : i32
    %c0_i32_1 = arith.constant 0 : i32
    return %c0_i32, %c0_i32_0 : i32, i32
  }
  func.func @transform_4(%arg0: i32) -> (i32, i32) {
    %c0_i32 = arith.constant 0 : i32
    %c0_i32_0 = arith.constant 0 : i32
    %c0_i32_1 = arith.constant 0 : i32
    return %c0_i32, %c0_i32_0 : i32, i32
  }
  func.func @transform_5(%arg0: i32) -> (i32, i32) {
    %c0_i32 = arith.constant 0 : i32
    %c0_i32_0 = arith.constant 0 : i32
    %c0_i32_1 = arith.constant 0 : i32
    return %c0_i32, %c0_i32_0 : i32, i32
  }
  func.func @transform_6(%arg0: i32) -> (i32, i32) {
    %c0_i32 = arith.constant 0 : i32
    %c0_i32_0 = arith.constant 0 : i32
    %c0_i32_1 = arith.constant 0 : i32
    return %c0_i32, %c0_i32_0 : i32, i32
  }
  func.func @transform_7(%arg0: i32) -> (i32, i32) {
    %c0_i32 = arith.constant 0 : i32
    %c0_i32_0 = arith.constant 0 : i32
    %c0_i32_1 = arith.constant 0 : i32
    return %c0_i32, %c0_i32_0 : i32, i32
  }
  func.func @transform_8(%arg0: i32) -> (i32, i32) {
    %c0_i32 = arith.constant 0 : i32
    %c0_i32_0 = arith.constant 0 : i32
    %c0_i32_1 = arith.constant 0 : i32
    return %c0_i32, %c0_i32_0 : i32, i32
  }
  func.func @transform_9(%arg0: i32) -> (i32, i32) {
    %c0_i32 = arith.constant 0 : i32
    %c0_i32_0 = arith.constant 0 : i32
    return %arg0, %c0_i32 : i32, i32
  }
}

</mosaic_0001>

<llo_original>
// kernel: _mlp_pallas.1
$region0: #{_mlp_pallas.1}
  #allocation0 [shape = 'u32[]', space=smem, size = 0x4, offset = 0x4, fixed_abs, tag = 'smem constant byte address 0x4 - core index']
  #allocation1 [shape = 'u32[144,128]{1,0:T(1,128)}', space=vmem, size = 0x12000, scoped, tag = 'internal scratch']
  %s0 = inlined_call_operand.vmem [shape: f32[16,32], index: 0, kind: input, shape index: {}]
  %s1 = inlined_call_operand.vmem [shape: f32[32,128], index: 1, kind: input, shape index: {}]
  %s2 = inlined_call_operand.vmem [shape: f32[1,128], index: 2, kind: input, shape index: {}]
  %s3 = inlined_call_operand.hbm [shape: f32[128,256], index: 3, kind: input, shape index: {}]
  %s4 = inlined_call_operand.vmem [shape: f32[1,256], index: 4, kind: input, shape index: {}]
  %s5 = inlined_call_operand.hbm [shape: f32[256,128], index: 5, kind: input, shape index: {}]
  %s6 = inlined_call_operand.vmem [shape: f32[1,128], index: 6, kind: input, shape index: {}]
  %s7 = inlined_call_operand.vmem [shape: f32[128,16], index: 7, kind: input, shape index: {}]
  %s8 = inlined_call_operand.vmem [shape: f32[1,16], index: 8, kind: input, shape index: {}]
  %s9 = inlined_call_operand.hbm [shape: f32[16,16], index: 9, kind: output, shape index: {}]
  %s10 = sld [smem:[#allocation0]]
  $region77: #{_mlp_pallas.1} parent=0
    _
  %s12 = ssub.s32 1, %s10
  %s13 = scalar_select 0, %s12, %s10
  $region1: #{_mlp_pallas.1} parent=0
    #allocation2 [shape = 'u8[131072]{0}', space=vmem, size = 0x20000, scoped, tag = 'input window, operand 3, single buffered']
    #allocation3 [shape = 's32[2]{0}', space=sflag, size = 0x8, scoped, tag = 'scoped memory for _mlp_pallas.1']
    #allocation4 [shape = 's32[2]{0}', space=sflag, size = 0x8, scoped, tag = 'scoped memory for _mlp_pallas.1']
    #allocation5 [shape = 'u8[131072]{0}', space=vmem, size = 0x20000, scoped, tag = 'input window, operand 5, single buffered']
    #allocation6 [shape = 's32[1]{0}', space=sflag, size = 0x4, scoped, tag = 'scoped memory for _mlp_pallas.1']
    #allocation7 [shape = 'u8[8192]{0}', space=vmem, size = 0x2000, scoped, tag = 'output window, operand 0']
    %14 = vsyncpa [#allocation3], 0
    %15 = vsyncpa [#allocation6], 0
    %16 = vsyncpa [#allocation4], 0
    %s17 = scalar_lea.sflag [#allocation4], 1
    %18 = vsyncpa %s17, 0
    loop: start=0, step=1, limit=4
    $region2: #{_mlp_pallas.1} parent=1 // loop_pre_header
      _
    $region3: #{_mlp_pallas.1} parent=1 // loop_header
      %s20 = sphi 0, %s24
      %p21 = scmp.ge.s32.totalorder %s20, 4
      %s30 = sphi 0, %s32
      %s33 = sphi 0, %s30
      %s34 = sphi 0, %s33
      %s50 = sphi 0, %s34
      %s54 = sphi 0, %s54
      %s56 = sphi 0, %s54
      %s57 = sphi 0, %s56
      %s71 = sphi 0, %s57
      %s75 = sphi 0, %s75
      %s77 = sphi 0, %s75
      %s78 = sphi 0, %s77
      %s92 = sphi 0, %s78
      %s96 = sphi 0, %s96
      %s98 = sphi 0, %s96
      %s99 = sphi 0, %s98
      %s113 = sphi 0, %s99
      %s117 = sphi 0, %s117
      %s119 = sphi 0, %s117
      %s120 = sphi 0, %s119
      %s134 = sphi 0, %s120
      %s138 = sphi 0, %s138
      %s140 = sphi 0, %s138
      %s141 = sphi 0, %s140
      %s155 = sphi 0, %s141
      %s159 = sphi 0, %s159
      %s161 = sphi 0, %s159
      %s162 = sphi 0, %s161
      %s176 = sphi 0, %s162
      %s180 = sphi 0, %s180
      %s182 = sphi 0, %s180
      %s183 = sphi 0, %s182
      %s197 = sphi 0, %s183
      %s201 = sphi 0, %s201
      %s203 = sphi 0, %s201
      %s204 = sphi 0, %s203
      %s218 = sphi 0, %s204
      %s224 = sphi 0, %s226
      %s227 = sphi 0, %s224
      %s228 = sphi 0, %s227
      %s244 = sphi 0, %s228
    $region4: #{_mlp_pallas.1} parent=1 // loop_header_branch
      %23 = sbr.rel (%p21) target = $region8
    $region5: #{_mlp_pallas.1} parent=1 // loop_body
      %s25 = ssub.s32 %s20, 1
      %s26 = ssub.s32 %s20, 2
      %s27 = sadd.s32 %s20, 1
      %s28 = ssub.s32 %s20, %s27
      %p29 = scmp.eq.s32.totalorder %s28, 0
      %s31 = sadd.s32 %s30, 1
      %s32 = scalar_select %p29, %s30, %s31
      %p35 = pneg %p29
      %p36 = scmp.eq.s32.totalorder %s20, 1
      %p37 = por %p35, %p36
      %p38 = scmp.ne.s32.totalorder %s30, %s33
      %p39 = scmp.eq.s32.totalorder %s20, 0
      %p40 = por %p38, %p39
      %p41 = scmp.ne.s32.totalorder %s30, %s33
      %p42 = scmp.eq.s32.totalorder %s25, 1
      %p43 = por %p41, %p42
      %p44 = scmp.ne.s32.totalorder %s33, %s34
      %p45 = scmp.eq.s32.totalorder %s25, 0
      %p46 = por %p44, %p45
      %p47 = scmp.ne.s32.totalorder %s33, %s34
      %p48 = scmp.eq.s32.totalorder %s26, 1
      %p49 = por %p47, %p48
      %p51 = scmp.ne.s32.totalorder %s34, %s50
      %p52 = scmp.eq.s32.totalorder %s26, 0
      %p53 = por %p51, %p52
      %s55 = sadd.s32 %s54, 1
      %p58 = scmp.eq.s32.totalorder %s20, 1
      %p59 = scmp.ne.s32.totalorder %s54, %s56
      %p60 = scmp.eq.s32.totalorder %s20, 0
      %p61 = por %p59, %p60
      %p62 = scmp.ne.s32.totalorder %s54, %s56
      %p63 = scmp.eq.s32.totalorder %s25, 1
      %p64 = por %p62, %p63
      %p65 = scmp.ne.s32.totalorder %s56, %s57
      %p66 = scmp.eq.s32.totalorder %s25, 0
      %p67 = por %p65, %p66
      %p68 = scmp.ne.s32.totalorder %s56, %s57
      %p69 = scmp.eq.s32.totalorder %s26, 1
      %p70 = por %p68, %p69
      %p72 = scmp.ne.s32.totalorder %s57, %s71
      %p73 = scmp.eq.s32.totalorder %s26, 0
      %p74 = por %p72, %p73
      %s76 = sadd.s32 %s75, 1
      %p79 = scmp.eq.s32.totalorder %s20, 1
      %p80 = scmp.ne.s32.totalorder %s75, %s77
      %p81 = scmp.eq.s32.totalorder %s20, 0
      %p82 = por %p80, %p81
      %p83 = scmp.ne.s32.totalorder %s75, %s77
      %p84 = scmp.eq.s32.totalorder %s25, 1
      %p85 = por %p83, %p84
      %p86 = scmp.ne.s32.totalorder %s77, %s78
      %p87 = scmp.eq.s32.totalorder %s25, 0
      %p88 = por %p86, %p87
      %p89 = scmp.ne.s32.totalorder %s77, %s78
      %p90 = scmp.eq.s32.totalorder %s26, 1
      %p91 = por %p89, %p90
      %p93 = scmp.ne.s32.totalorder %s78, %s92
      %p94 = scmp.eq.s32.totalorder %s26, 0
      %p95 = por %p93, %p94
      %s97 = sadd.s32 %s96, 1
      %p100 = scmp.eq.s32.totalorder %s20, 1
      %p101 = scmp.ne.s32.totalorder %s96, %s98
      %p102 = scmp.eq.s32.totalorder %s20, 0
      %p103 = por %p101, %p102
      %p104 = scmp.ne.s32.totalorder %s96, %s98
      %p105 = scmp.eq.s32.totalorder %s25, 1
      %p106 = por %p104, %p105
      %p107 = scmp.ne.s32.totalorder %s98, %s99
      %p108 = scmp.eq.s32.totalorder %s25, 0
      %p109 = por %p107, %p108
      %p110 = scmp.ne.s32.totalorder %s98, %s99
      %p111 = scmp.eq.s32.totalorder %s26, 1
      %p112 = por %p110, %p111
      %p114 = scmp.ne.s32.totalorder %s99, %s113
      %p115 = scmp.eq.s32.totalorder %s26, 0
      %p116 = por %p114, %p115
      %s118 = sadd.s32 %s117, 1
      %p121 = scmp.eq.s32.totalorder %s20, 1
      %p122 = scmp.ne.s32.totalorder %s117, %s119
      %p123 = scmp.eq.s32.totalorder %s20, 0
      %p124 = por %p122, %p123
      %p125 = scmp.ne.s32.totalorder %s117, %s119
      %p126 = scmp.eq.s32.totalorder %s25, 1
      %p127 = por %p125, %p126
      %p128 = scmp.ne.s32.totalorder %s119, %s120
      %p129 = scmp.eq.s32.totalorder %s25, 0
      %p130 = por %p128, %p129
      %p131 = scmp.ne.s32.totalorder %s119, %s120
      %p132 = scmp.eq.s32.totalorder %s26, 1
      %p133 = por %p131, %p132
      %p135 = scmp.ne.s32.totalorder %s120, %s134
      %p136 = scmp.eq.s32.totalorder %s26, 0
      %p137 = por %p135, %p136
      %s139 = sadd.s32 %s138, 1
      %p142 = scmp.eq.s32.totalorder %s20, 1
      %p143 = scmp.ne.s32.totalorder %s138, %s140
      %p144 = scmp.eq.s32.totalorder %s20, 0
      %p145 = por %p143, %p144
      %p146 = scmp.ne.s32.totalorder %s138, %s140
      %p147 = scmp.eq.s32.totalorder %s25, 1
      %p148 = por %p146, %p147
      %p149 = scmp.ne.s32.totalorder %s140, %s141
      %p150 = scmp.eq.s32.totalorder %s25, 0
      %p151 = por %p149, %p150
      %p152 = scmp.ne.s32.totalorder %s140, %s141
      %p153 = scmp.eq.s32.totalorder %s26, 1
      %p154 = por %p152, %p153
      %p156 = scmp.ne.s32.totalorder %s141, %s155
      %p157 = scmp.eq.s32.totalorder %s26, 0
      %p158 = por %p156, %p157
      %s160 = sadd.s32 %s159, 1
      %p163 = scmp.eq.s32.totalorder %s20, 1
      %p164 = scmp.ne.s32.totalorder %s159, %s161
      %p165 = scmp.eq.s32.totalorder %s20, 0
      %p166 = por %p164, %p165
      %p167 = scmp.ne.s32.totalorder %s159, %s161
      %p168 = scmp.eq.s32.totalorder %s25, 1
      %p169 = por %p167, %p168
      %p170 = scmp.ne.s32.totalorder %s161, %s162
      %p171 = scmp.eq.s32.totalorder %s25, 0
      %p172 = por %p170, %p171
      %p173 = scmp.ne.s32.totalorder %s161, %s162
      %p174 = scmp.eq.s32.totalorder %s26, 1
      %p175 = por %p173, %p174
      %p177 = scmp.ne.s32.totalorder %s162, %s176
      %p178 = scmp.eq.s32.totalorder %s26, 0
      %p179 = por %p177, %p178
      %s181 = sadd.s32 %s180, 1
      %p184 = scmp.eq.s32.totalorder %s20, 1
      %p185 = scmp.ne.s32.totalorder %s180, %s182
      %p186 = scmp.eq.s32.totalorder %s20, 0
      %p187 = por %p185, %p186
      %p188 = scmp.ne.s32.totalorder %s180, %s182
      %p189 = scmp.eq.s32.totalorder %s25, 1
      %p190 = por %p188, %p189
      %p191 = scmp.ne.s32.totalorder %s182, %s183
      %p192 = scmp.eq.s32.totalorder %s25, 0
      %p193 = por %p191, %p192
      %p194 = scmp.ne.s32.totalorder %s182, %s183
      %p195 = scmp.eq.s32.totalorder %s26, 1
      %p196 = por %p194, %p195
      %p198 = scmp.ne.s32.totalorder %s183, %s197
      %p199 = scmp.eq.s32.totalorder %s26, 0
      %p200 = por %p198, %p199
      %s202 = sadd.s32 %s201, 1
      %p205 = scmp.eq.s32.totalorder %s20, 1
      %p206 = scmp.ne.s32.totalorder %s201, %s203
      %p207 = scmp.eq.s32.totalorder %s20, 0
      %p208 = por %p206, %p207
      %p209 = scmp.ne.s32.totalorder %s201, %s203
      %p210 = scmp.eq.s32.totalorder %s25, 1
      %p211 = por %p209, %p210
      %p212 = scmp.ne.s32.totalorder %s203, %s204
      %p213 = scmp.eq.s32.totalorder %s25, 0
      %p214 = por %p212, %p213
      %p215 = scmp.ne.s32.totalorder %s203, %s204
      %p216 = scmp.eq.s32.totalorder %s26, 1
      %p217 = por %p215, %p216
      %p219 = scmp.ne.s32.totalorder %s204, %s218
      %p220 = scmp.eq.s32.totalorder %s26, 0
      %p221 = por %p219, %p220
      %s222 = ssub.s32 %s20, %s27
      %p223 = scmp.eq.s32.totalorder %s222, 0
      %s225 = sadd.s32 %s224, 1
      %s226 = scalar_select %p223, %s224, %s225
      %p229 = pneg %p223
      %p230 = scmp.eq.s32.totalorder %s20, 1
      %p231 = por %p229, %p230
      %p232 = scmp.ne.s32.totalorder %s224, %s227
      %p233 = scmp.eq.s32.totalorder %s20, 0
      %p234 = por %p232, %p233
      %p235 = scmp.ne.s32.totalorder %s224, %s227
      %p236 = scmp.eq.s32.totalorder %s25, 1
      %p237 = por %p235, %p236
      %p238 = scmp.ne.s32.totalorder %s227, %s228
      %p239 = scmp.eq.s32.totalorder %s25, 0
      %p240 = por %p238, %p239
      %p241 = scmp.ne.s32.totalorder %s227, %s228
      %p242 = scmp.eq.s32.totalorder %s26, 1
      %p243 = por %p241, %p242
      %p245 = scmp.ne.s32.totalorder %s228, %s244
      %p246 = scmp.eq.s32.totalorder %s26, 0
      %p247 = por %p245, %p246
      %p248 = scmp.le.s32.totalorder 1, %s20
      %p249 = scmp.lt.s32.totalorder %s20, 3
      %p250 = pnand %p248, %p249
      %p251 = pneg %p250
      // Predicated region
      $region9: #{_mlp_pallas.1} parent=5 // pred_check
        _
      $region10: #{_mlp_pallas.1} parent=5 // pred_check_branch
        %253 = sbr.rel (%p250) target = $region12
      $region11: #{_mlp_pallas.1} parent=5 // pred_region
        %s254 = ssub.s32 %s20, 1
        // Predicated region
        $region13: #{_mlp_pallas.1} parent=11 // pred_check
          %p255 = pneg %p67
        $region14: #{_mlp_pallas.1} parent=11 // pred_check_branch
          %257 = sbr.rel (%p255) target = $region16
        $region15: #{_mlp_pallas.1} parent=11 // pred_region
          _
        $region16: #{_mlp_pallas.1} parent=11 // pred_fallthru
          _
        // Predicated region
        $region17: #{_mlp_pallas.1} parent=11 // pred_check
          %p258 = pneg %p88
        $region18: #{_mlp_pallas.1} parent=11 // pred_check_branch
          %260 = sbr.rel (%p258) target = $region20
        $region19: #{_mlp_pallas.1} parent=11 // pred_region
          _
        $region20: #{_mlp_pallas.1} parent=11 // pred_fallthru
          _
        // Predicated region
        $region21: #{_mlp_pallas.1} parent=11 // pred_check
          %p261 = pneg %p109
        $region22: #{_mlp_pallas.1} parent=11 // pred_check_branch
          %263 = sbr.rel (%p261) target = $region24
        $region23: #{_mlp_pallas.1} parent=11 // pred_region
          %s265 = ssub.s32 4096, 4096
          %266 = vsyncadd [#allocation3], %s265
          %s267 = sshll.u32 [#allocation2], 4
          %s268 = int_to_ptr.vmem [resolvable:$true] %s267
          %273 = dma.hbm_to_vmem [thread:$0]  %s3, 4096, %s268, [#allocation3], 256, 256, 16
        $region24: #{_mlp_pallas.1} parent=11 // pred_fallthru
          _
        // Predicated region
        $region25: #{_mlp_pallas.1} parent=11 // pred_check
          %p274 = pneg %p130
        $region26: #{_mlp_pallas.1} parent=11 // pred_check_branch
          %276 = sbr.rel (%p274) target = $region28
        $region27: #{_mlp_pallas.1} parent=11 // pred_region
          _
        $region28: #{_mlp_pallas.1} parent=11 // pred_fallthru
          _
        // Predicated region
        $region29: #{_mlp_pallas.1} parent=11 // pred_check
          %p277 = pneg %p151
        $region30: #{_mlp_pallas.1} parent=11 // pred_check_branch
          %279 = sbr.rel (%p277) target = $region32
        $region31: #{_mlp_pallas.1} parent=11 // pred_region
          %s281 = ssub.s32 4096, 4096
          %282 = vsyncadd [#allocation6], %s281
          %s283 = sshll.u32 [#allocation5], 4
          %s284 = int_to_ptr.vmem [resolvable:$true] %s283
          %289 = dma.hbm_to_vmem [thread:$0]  %s5, 4096, %s284, [#allocation6], 128, 128, 8
        $region32: #{_mlp_pallas.1} parent=11 // pred_fallthru
          _
        // Predicated region
        $region33: #{_mlp_pallas.1} parent=11 // pred_check
          %p290 = pneg %p172
        $region34: #{_mlp_pallas.1} parent=11 // pred_check_branch
          %292 = sbr.rel (%p290) target = $region36
        $region35: #{_mlp_pallas.1} parent=11 // pred_region
          _
        $region36: #{_mlp_pallas.1} parent=11 // pred_fallthru
          _
        // Predicated region
        $region37: #{_mlp_pallas.1} parent=11 // pred_check
          %p293 = pneg %p193
        $region38: #{_mlp_pallas.1} parent=11 // pred_check_branch
          %295 = sbr.rel (%p293) target = $region40
        $region39: #{_mlp_pallas.1} parent=11 // pred_region
          _
        $region40: #{_mlp_pallas.1} parent=11 // pred_fallthru
          _
        // Predicated region
        $region41: #{_mlp_pallas.1} parent=11 // pred_check
          %p296 = pneg %p214
        $region42: #{_mlp_pallas.1} parent=11 // pred_check_branch
          %298 = sbr.rel (%p296) target = $region44
        $region43: #{_mlp_pallas.1} parent=11 // pred_region
          _
        $region44: #{_mlp_pallas.1} parent=11 // pred_fallthru
          _
      $region12: #{_mlp_pallas.1} parent=5 // pred_fallthru
        _
      %p299 = scmp.lt.s32.totalorder %s20, 2
      // Predicated region
      $region45: #{_mlp_pallas.1} parent=5 // pred_check
        %p300 = pneg %p299
      $region46: #{_mlp_pallas.1} parent=5 // pred_check_branch
        %302 = sbr.rel (%p300) target = $region48
      $region47: #{_mlp_pallas.1} parent=5 // pred_region
        // Predicated region
        $region49: #{_mlp_pallas.1} parent=47 // pred_check
          %p303 = pneg %p40
        $region50: #{_mlp_pallas.1} parent=47 // pred_check_branch
          %305 = sbr.rel (%p303) target = $region52
        $region51: #{_mlp_pallas.1} parent=47 // pred_region
          %p306 = scmp.lt.s32.totalorder %s20, 1
          %s307 = scalar_select %p306, %s20, 1
          %s308 = smul.addr %s307, 8
          %s309 = scalar_lea.vmem %s0, %s308
        $region52: #{_mlp_pallas.1} parent=47 // pred_fallthru
          _
      $region48: #{_mlp_pallas.1} parent=5 // pred_fallthru
        _
      %p310 = scmp.le.s32.totalorder 1, %s20
      %p311 = scmp.lt.s32.totalorder %s20, 3
      %p312 = pnand %p310, %p311
      %p313 = pneg %p312
      // Predicated region
      $region53: #{_mlp_pallas.1} parent=5 // pred_check
        _
      $region54: #{_mlp_pallas.1} parent=5 // pred_check_branch
        %315 = sbr.rel (%p312) target = $region56
      $region55: #{_mlp_pallas.1} parent=5 // pred_region
        %s316 = ssub.s32 %s20, 1
        // Predicated region
        $region57: #{_mlp_pallas.1} parent=55 // pred_check
          %p317 = pneg %p109
        $region58: #{_mlp_pallas.1} parent=55 // pred_check_branch
          %319 = sbr.rel (%p317) target = $region60
        $region59: #{_mlp_pallas.1} parent=55 // pred_region
          %320 = dma.done [#allocation3], 4096
        $region60: #{_mlp_pallas.1} parent=55 // pred_fallthru
          _
        // Predicated region
        $region61: #{_mlp_pallas.1} parent=55 // pred_check
          %p321 = pneg %p151
        $region62: #{_mlp_pallas.1} parent=55 // pred_check_branch
          %323 = sbr.rel (%p321) target = $region64
        $region63: #{_mlp_pallas.1} parent=55 // pred_region
          %324 = dma.done [#allocation6], 4096
        $region64: #{_mlp_pallas.1} parent=55 // pred_fallthru
          _
        %p325 = scmp.lt.s32.totalorder %s25, 1
        %s326 = scalar_select %p325, %s25, 1
        %s327 = smul.addr %s326, 8
        %s328 = scalar_lea.vmem %s0, %s327
        %p329 = pneg %p46
        %p330 = pneg %p43
        %p331 = pneg %p67
        %p332 = pneg %p64
        %p333 = pneg %p88
        %p334 = pneg %p85
        %p335 = pneg %p109
        %p336 = pneg %p106
        %p337 = pneg %p130
        %p338 = pneg %p127
        %p339 = pneg %p151
        %p340 = pneg %p148
        %p341 = pneg %p172
        %p342 = pneg %p169
        %p343 = pneg %p193
        %p344 = pneg %p190
        %p345 = pneg %p214
        %p346 = pneg %p211
        %p347 = pneg %p240
        %p348 = pneg %p237
        %s349 = sand.u32 %s227, 1
        %s350 = scalar_lea.sflag [#allocation4], %s349
        %s351 = sand.u32 %s227, 1
        %s352 = smul.addr %s351, 8
        %s353 = scalar_lea.vmem [#allocation7], %s352
        %p354 = scmp.lt.s32.totalorder %s25, 1
        %s355 = scalar_select %p354, %s25, 1
        %s356 = smul.addr %s355, 8
        %s357 = scalar_lea.vmem %s0, %s356
        %v358 = vld [vmem:[%s357] sm:$0xff]
        %v359 = vld [vmem:[%s1] sm:$0xff]
        %v360 = vld [vmem:[%s1 + $0x8] sm:$0xff]
        %v361 = vld [vmem:[%s1 + $0x10] sm:$0xff]
        %v362 = vld [vmem:[%s1 + $0x18] sm:$0xff]
        %v363 = vld [vmem:[%s2] sm:$0x1]
        %v365 = vlaneseq
        %v366 = vshrl.u32 %v365, 7
        %v367 = vsub.s32 0, %v366
        %v368 = vrot.slane %v363, %v367
        %vm370 = vcmask 261120
        %v372 = vsel %vm370, %v358, 0
        %374 = vmatprep.subr.mxu0 0.0
        %375 = vmatpush1.msra.mxu0 %v359
        %376 = vmatprep.subr.mxu0 0.0
        %377 = vmatpush1.msra.mxu0 %v360
        %378 = vmatprep.subr.mxu0 0.0
        %379 = vmatpush1.msra.mxu0 %v361
        %380 = vmatprep.subr.mxu0 0.0
        %381 = vmatpush1.msra.mxu0 %v362
        %382 = vmatprep.subr.mxu0 0.0
        %383 = vmatpush1.msra.mxu0 0.0
        %384 = vmatprep.subr.mxu0 0.0
        %385 = vmatpush1.msra.mxu0 0.0
        %386 = vmatprep.subr.mxu0 0.0
        %387 = vmatpush1.msra.mxu0 0.0
        %388 = vmatprep.subr.mxu0 0.0
        %389 = vmatpush1.msra.mxu0 0.0
        %390 = vmatprep.subr.mxu0 0.0
        %391 = vmatpush1.msra.mxu0 0.0
        %392 = vmatprep.subr.mxu0 0.0
        %393 = vmatpush1.msra.mxu0 0.0
        %394 = vmatprep.subr.mxu0 0.0
        %395 = vmatpush1.msra.mxu0 0.0
        %396 = vmatprep.subr.mxu0 0.0
        %397 = vmatpush1.msra.mxu0 0.0
        %398 = vmatprep.subr.mxu0 0.0
        %399 = vmatpush1.msra.mxu0 0.0
        %400 = vmatprep.subr.mxu0 0.0
        %401 = vmatpush1.msra.mxu0 0.0
        %402 = vmatprep.subr.mxu0 0.0
        %403 = vmatpush1.msra.mxu0 0.0
        %404 = vmatprep.subr.mxu0 0.0
        %405 = vmatpush1.msra.mxu0 0.0
        %406 = vmatprep.subr.mxu0 0.0
        %407 = vmatpush1.msra.mxu0 0.0
        %408 = vmatprep.subr.mxu0 0.0
        %409 = vmatpush1.msra.mxu0 0.0
        %410 = vmatprep.subr.mxu0 0.0
        %411 = vmatpush1.msra.mxu0 0.0
        %412 = vmatprep.subr.mxu0 0.0
        %413 = vmatpush1.msra.mxu0 0.0
        %414 = vmatprep.subr.mxu0 0.0
        %415 = vmatpush1.msra.mxu0 0.0
        %416 = vmatprep.subr.mxu0 0.0
        %417 = vmatpush1.msra.mxu0 0.0
        %418 = vmatprep.subr.mxu0 0.0
        %419 = vmatpush1.msra.mxu0 0.0
        %420 = vmatprep.subr.mxu0 0.0
        %421 = vmatpush1.msra.mxu0 0.0
        %422 = vmatprep.subr.mxu0 0.0
        %423 = vmatpush1.msra.mxu0 0.0
        %424 = vmatprep.subr.mxu0 0.0
        %425 = vmatpush1.msra.mxu0 0.0
        %426 = vmatprep.subr.mxu0 0.0
        %427 = vmatpush1.msra.mxu0 0.0
        %428 = vmatprep.subr.mxu0 0.0
        %429 = vmatpush1.msra.mxu0 0.0
        %430 = vmatprep.subr.mxu0 0.0
        %431 = vmatpush1.msra.mxu0 0.0
        %432 = vmatprep.subr.mxu0 0.0
        %433 = vmatpush1.msra.mxu0 0.0
        %434 = vmatprep.subr.mxu0 0.0
        %435 = vmatpush1.msra.mxu0 0.0
        %436 = vmatprep.subr.mxu0 0.0
        %437 = vmatpush1.msra.mxu0 0.0
        %438 = vmatprep.mubr.f32.mxu0 0.0
        %439 = vmatmul.mubr.f32.gmra.mrb[0].mxu0 %v372
        %v440 = vpop.f32.mrb[0].mxu0
        %v441 = vadd.f32 %v368, %v440
        %v442 = vpop.f32.mrb[0].mxu0
        %443 = vdwg.mxu0
        %v444 = vmax.f32 %v441, 0.0
        %v445 = vld [vmem:[#allocation2] sm:$0xff]
        %v446 = vld [vmem:[#allocation2 + $0x8] sm:$0xff]
        %v447 = vld [vmem:[#allocation2 + $0x10] sm:$0xff]
        %v448 = vld [vmem:[#allocation2 + $0x18] sm:$0xff]
        %v449 = vld [vmem:[#allocation2 + $0x20] sm:$0xff]
        %v450 = vld [vmem:[#allocation2 + $0x28] sm:$0xff]
        %v451 = vld [vmem:[#allocation2 + $0x30] sm:$0xff]
        %v452 = vld [vmem:[#allocation2 + $0x38] sm:$0xff]
        %v453 = vld [vmem:[#allocation2 + $0x40] sm:$0xff]
        %v454 = vld [vmem:[#allocation2 + $0x48] sm:$0xff]
        %v455 = vld [vmem:[#allocation2 + $0x50] sm:$0xff]
        %v456 = vld [vmem:[#allocation2 + $0x58] sm:$0xff]
        %v457 = vld [vmem:[#allocation2 + $0x60] sm:$0xff]
        %v458 = vld [vmem:[#allocation2 + $0x68] sm:$0xff]
        %v459 = vld [vmem:[#allocation2 + $0x70] sm:$0xff]
        %v460 = vld [vmem:[#allocation2 + $0x78] sm:$0xff]
        %v461 = vld [vmem:[#allocation2 + $0x80] sm:$0xff]
        %v462 = vld [vmem:[#allocation2 + $0x88] sm:$0xff]
        %v463 = vld [vmem:[#allocation2 + $0x90] sm:$0xff]
        %v464 = vld [vmem:[#allocation2 + $0x98] sm:$0xff]
        %v465 = vld [vmem:[#allocation2 + $0xa0] sm:$0xff]
        %v466 = vld [vmem:[#allocation2 + $0xa8] sm:$0xff]
        %v467 = vld [vmem:[#allocation2 + $0xb0] sm:$0xff]
        %v468 = vld [vmem:[#allocation2 + $0xb8] sm:$0xff]
        %v469 = vld [vmem:[#allocation2 + $0xc0] sm:$0xff]
        %v470 = vld [vmem:[#allocation2 + $0xc8] sm:$0xff]
        %v471 = vld [vmem:[#allocation2 + $0xd0] sm:$0xff]
        %v472 = vld [vmem:[#allocation2 + $0xd8] sm:$0xff]
        %v473 = vld [vmem:[#allocation2 + $0xe0] sm:$0xff]
        %v474 = vld [vmem:[#allocation2 + $0xe8] sm:$0xff]
        %v475 = vld [vmem:[#allocation2 + $0xf0] sm:$0xff]
        %v476 = vld [vmem:[#allocation2 + $0xf8] sm:$0xff]
        %v477 = vld [vmem:[%s4] sm:$0x3]
        %v479 = vlaneseq
        %v480 = vshrl.u32 %v479, 7
        %v481 = vsub.s32 0, %v480
        %v482 = vrot.slane %v477, %v481
        %v483 = vlaneseq
        %v484 = vshrl.u32 %v483, 7
        %v485 = vsub.s32 1, %v484
        %v486 = vrot.slane %v477, %v485
        %489 = vmatprep.subr.mxu0 %v446
        %490 = vmatpush1.msra.mxu0 %v445
        %491 = vmatprep.subr.mxu0 %v448
        %492 = vmatpush1.msra.mxu0 %v447
        %493 = vmatprep.subr.mxu0 %v450
        %494 = vmatpush1.msra.mxu0 %v449
        %495 = vmatprep.subr.mxu0 %v452
        %496 = vmatpush1.msra.mxu0 %v451
        %497 = vmatprep.subr.mxu0 %v454
        %498 = vmatpush1.msra.mxu0 %v453
        %499 = vmatprep.subr.mxu0 %v456
        %500 = vmatpush1.msra.mxu0 %v455
        %501 = vmatprep.subr.mxu0 %v458
        %502 = vmatpush1.msra.mxu0 %v457
        %503 = vmatprep.subr.mxu0 %v460
        %504 = vmatpush1.msra.mxu0 %v459
        %505 = vmatprep.subr.mxu0 %v462
        %506 = vmatpush1.msra.mxu0 %v461
        %507 = vmatprep.subr.mxu0 %v464
        %508 = vmatpush1.msra.mxu0 %v463
        %509 = vmatprep.subr.mxu0 %v466
        %510 = vmatpush1.msra.mxu0 %v465
        %511 = vmatprep.subr.mxu0 %v468
        %512 = vmatpush1.msra.mxu0 %v467
        %513 = vmatprep.subr.mxu0 %v470
        %514 = vmatpush1.msra.mxu0 %v469
        %515 = vmatprep.subr.mxu0 %v472
        %516 = vmatpush1.msra.mxu0 %v471
        %517 = vmatprep.subr.mxu0 %v474
        %518 = vmatpush1.msra.mxu0 %v473
        %519 = vmatprep.subr.mxu0 %v476
        %520 = vmatpush1.msra.mxu0 %v475
        %521 = vmatprep.subr.mxu0 0.0
        %522 = vmatpush1.msra.mxu0 0.0
        %523 = vmatprep.subr.mxu0 0.0
        %524 = vmatpush1.msra.mxu0 0.0
        %525 = vmatprep.subr.mxu0 0.0
        %526 = vmatpush1.msra.mxu0 0.0
        %527 = vmatprep.subr.mxu0 0.0
        %528 = vmatpush1.msra.mxu0 0.0
        %529 = vmatprep.subr.mxu0 0.0
        %530 = vmatpush1.msra.mxu0 0.0
        %531 = vmatprep.subr.mxu0 0.0
        %532 = vmatpush1.msra.mxu0 0.0
        %533 = vmatprep.subr.mxu0 0.0
        %534 = vmatpush1.msra.mxu0 0.0
        %535 = vmatprep.subr.mxu0 0.0
        %536 = vmatpush1.msra.mxu0 0.0
        %537 = vmatprep.subr.mxu0 0.0
        %538 = vmatpush1.msra.mxu0 0.0
        %539 = vmatprep.subr.mxu0 0.0
        %540 = vmatpush1.msra.mxu0 0.0
        %541 = vmatprep.subr.mxu0 0.0
        %542 = vmatpush1.msra.mxu0 0.0
        %543 = vmatprep.subr.mxu0 0.0
        %544 = vmatpush1.msra.mxu0 0.0
        %545 = vmatprep.subr.mxu0 0.0
        %546 = vmatpush1.msra.mxu0 0.0
        %547 = vmatprep.subr.mxu0 0.0
        %548 = vmatpush1.msra.mxu0 0.0
        %549 = vmatprep.subr.mxu0 0.0
        %550 = vmatpush1.msra.mxu0 0.0
        %551 = vmatprep.subr.mxu0 0.0
        %552 = vmatpush1.msra.mxu0 0.0
        %553 = vmatprep.mubr.f32.mxu0 0.0
        %554 = vmatmul.mubr.f32.gmra.mrb[0].mxu0 %v444
        %v555 = vpop.f32.mrb[0].mxu0
        %v556 = vadd.f32 %v482, %v555
        %v557 = vpop.f32.mrb[0].mxu0
        %v558 = vadd.f32 %v486, %v557
        %559 = vdwg.mxu0
        %v560 = vmax.f32 %v556, 0.0
        %v561 = vmax.f32 %v558, 0.0
        %v562 = vld [vmem:[#allocation5] sm:$0xff]
        %v563 = vld [vmem:[#allocation5 + $0x8] sm:$0xff]
        %v564 = vld [vmem:[#allocation5 + $0x10] sm:$0xff]
        %v565 = vld [vmem:[#allocation5 + $0x18] sm:$0xff]
        %v566 = vld [vmem:[#allocation5 + $0x20] sm:$0xff]
        %v567 = vld [vmem:[#allocation5 + $0x28] sm:$0xff]
        %v568 = vld [vmem:[#allocation5 + $0x30] sm:$0xff]
        %v569 = vld [vmem:[#allocation5 + $0x38] sm:$0xff]
        %v570 = vld [vmem:[#allocation5 + $0x40] sm:$0xff]
        %v571 = vld [vmem:[#allocation5 + $0x48] sm:$0xff]
        %v572 = vld [vmem:[#allocation5 + $0x50] sm:$0xff]
        %v573 = vld [vmem:[#allocation5 + $0x58] sm:$0xff]
        %v574 = vld [vmem:[#allocation5 + $0x60] sm:$0xff]
        %v575 = vld [vmem:[#allocation5 + $0x68] sm:$0xff]
        %v576 = vld [vmem:[#allocation5 + $0x70] sm:$0xff]
        %v577 = vld [vmem:[#allocation5 + $0x78] sm:$0xff]
        %v578 = vld [vmem:[#allocation5 + $0x80] sm:$0xff]
        %v579 = vld [vmem:[#allocation5 + $0x88] sm:$0xff]
        %v580 = vld [vmem:[#allocation5 + $0x90] sm:$0xff]
        %v581 = vld [vmem:[#allocation5 + $0x98] sm:$0xff]
        %v582 = vld [vmem:[#allocation5 + $0xa0] sm:$0xff]
        %v583 = vld [vmem:[#allocation5 + $0xa8] sm:$0xff]
        %v584 = vld [vmem:[#allocation5 + $0xb0] sm:$0xff]
        %v585 = vld [vmem:[#allocation5 + $0xb8] sm:$0xff]
        %v586 = vld [vmem:[#allocation5 + $0xc0] sm:$0xff]
        %v587 = vld [vmem:[#allocation5 + $0xc8] sm:$0xff]
        %v588 = vld [vmem:[#allocation5 + $0xd0] sm:$0xff]
        %v589 = vld [vmem:[#allocation5 + $0xd8] sm:$0xff]
        %v590 = vld [vmem:[#allocation5 + $0xe0] sm:$0xff]
        %v591 = vld [vmem:[#allocation5 + $0xe8] sm:$0xff]
        %v592 = vld [vmem:[#allocation5 + $0xf0] sm:$0xff]
        %v593 = vld [vmem:[#allocation5 + $0xf8] sm:$0xff]
        %v594 = vld [vmem:[%s6] sm:$0x1]
        %v596 = vlaneseq
        %v597 = vshrl.u32 %v596, 7
        %v598 = vsub.s32 0, %v597
        %v599 = vrot.slane %v594, %v598
        %601 = vmatprep.subr.mxu0 0.0
        %602 = vmatpush1.msra.mxu0 %v562
        %603 = vmatprep.subr.mxu0 0.0
        %604 = vmatpush1.msra.mxu0 %v563
        %605 = vmatprep.subr.mxu0 0.0
        %606 = vmatpush1.msra.mxu0 %v564
        %607 = vmatprep.subr.mxu0 0.0
        %608 = vmatpush1.msra.mxu0 %v565
        %609 = vmatprep.subr.mxu0 0.0
        %610 = vmatpush1.msra.mxu0 %v566
        %611 = vmatprep.subr.mxu0 0.0
        %612 = vmatpush1.msra.mxu0 %v567
        %613 = vmatprep.subr.mxu0 0.0
        %614 = vmatpush1.msra.mxu0 %v568
        %615 = vmatprep.subr.mxu0 0.0
        %616 = vmatpush1.msra.mxu0 %v569
        %617 = vmatprep.subr.mxu0 0.0
        %618 = vmatpush1.msra.mxu0 %v570
        %619 = vmatprep.subr.mxu0 0.0
        %620 = vmatpush1.msra.mxu0 %v571
        %621 = vmatprep.subr.mxu0 0.0
        %622 = vmatpush1.msra.mxu0 %v572
        %623 = vmatprep.subr.mxu0 0.0
        %624 = vmatpush1.msra.mxu0 %v573
        %625 = vmatprep.subr.mxu0 0.0
        %626 = vmatpush1.msra.mxu0 %v574
        %627 = vmatprep.subr.mxu0 0.0
        %628 = vmatpush1.msra.mxu0 %v575
        %629 = vmatprep.subr.mxu0 0.0
        %630 = vmatpush1.msra.mxu0 %v576
        %631 = vmatprep.subr.mxu0 0.0
        %632 = vmatpush1.msra.mxu0 %v577
        %633 = vmatprep.subr.mxu0 0.0
        %634 = vmatpush1.msra.mxu0 %v578
        %635 = vmatprep.subr.mxu0 0.0
        %636 = vmatpush1.msra.mxu0 %v579
        %637 = vmatprep.subr.mxu0 0.0
        %638 = vmatpush1.msra.mxu0 %v580
        %639 = vmatprep.subr.mxu0 0.0
        %640 = vmatpush1.msra.mxu0 %v581
        %641 = vmatprep.subr.mxu0 0.0
        %642 = vmatpush1.msra.mxu0 %v582
        %643 = vmatprep.subr.mxu0 0.0
        %644 = vmatpush1.msra.mxu0 %v583
        %645 = vmatprep.subr.mxu0 0.0
        %646 = vmatpush1.msra.mxu0 %v584
        %647 = vmatprep.subr.mxu0 0.0
        %648 = vmatpush1.msra.mxu0 %v585
        %649 = vmatprep.subr.mxu0 0.0
        %650 = vmatpush1.msra.mxu0 %v586
        %651 = vmatprep.subr.mxu0 0.0
        %652 = vmatpush1.msra.mxu0 %v587
        %653 = vmatprep.subr.mxu0 0.0
        %654 = vmatpush1.msra.mxu0 %v588
        %655 = vmatprep.subr.mxu0 0.0
        %656 = vmatpush1.msra.mxu0 %v589
        %657 = vmatprep.subr.mxu0 0.0
        %658 = vmatpush1.msra.mxu0 %v590
        %659 = vmatprep.subr.mxu0 0.0
        %660 = vmatpush1.msra.mxu0 %v591
        %661 = vmatprep.subr.mxu0 0.0
        %662 = vmatpush1.msra.mxu0 %v592
        %663 = vmatprep.subr.mxu0 0.0
        %664 = vmatpush1.msra.mxu0 %v593
        %665 = vmatprep.mubr.f32.mxu0 %v561
        %666 = vmatmul.mubr.f32.gmra.mrb[0].mxu0 %v560
        %v667 = vpop.f32.mrb[0].mxu0
        %v668 = vadd.f32 %v599, %v667
        %v669 = vpop.f32.mrb[0].mxu0
        %670 = vdwg.mxu0
        %v671 = vmax.f32 %v668, 0.0
        %v672 = vld [vmem:[%s7] sm:$0xff]
        %v673 = vld [vmem:[%s7 + $0x8] sm:$0xff]
        %v674 = vld [vmem:[%s7 + $0x10] sm:$0xff]
        %v675 = vld [vmem:[%s7 + $0x18] sm:$0xff]
        %v676 = vld [vmem:[%s7 + $0x20] sm:$0xff]
        %v677 = vld [vmem:[%s7 + $0x28] sm:$0xff]
        %v678 = vld [vmem:[%s7 + $0x30] sm:$0xff]
        %v679 = vld [vmem:[%s7 + $0x38] sm:$0xff]
        %v680 = vld [vmem:[%s7 + $0x40] sm:$0xff]
        %v681 = vld [vmem:[%s7 + $0x48] sm:$0xff]
        %v682 = vld [vmem:[%s7 + $0x50] sm:$0xff]
        %v683 = vld [vmem:[%s7 + $0x58] sm:$0xff]
        %v684 = vld [vmem:[%s7 + $0x60] sm:$0xff]
        %v685 = vld [vmem:[%s7 + $0x68] sm:$0xff]
        %v686 = vld [vmem:[%s7 + $0x70] sm:$0xff]
        %v687 = vld [vmem:[%s7 + $0x78] sm:$0xff]
        %v688 = vld [vmem:[%s8] sm:$0x1]
        %v690 = vlaneseq
        %v691 = vshrl.u32 %v690, 7
        %v692 = vsub.s32 0, %v691
        %v693 = vrot.slane %v688, %v692
        %695 = vmatprep.subr.mxu0 0.0
        %696 = vmatpush1.msra.mxu0 %v672
        %697 = vmatprep.subr.mxu0 0.0
        %698 = vmatpush1.msra.mxu0 %v673
        %699 = vmatprep.subr.mxu0 0.0
        %700 = vmatpush1.msra.mxu0 %v674
        %701 = vmatprep.subr.mxu0 0.0
        %702 = vmatpush1.msra.mxu0 %v675
        %703 = vmatprep.subr.mxu0 0.0
        %704 = vmatpush1.msra.mxu0 %v676
        %705 = vmatprep.subr.mxu0 0.0
        %706 = vmatpush1.msra.mxu0 %v677
        %707 = vmatprep.subr.mxu0 0.0
        %708 = vmatpush1.msra.mxu0 %v678
        %709 = vmatprep.subr.mxu0 0.0
        %710 = vmatpush1.msra.mxu0 %v679
        %711 = vmatprep.subr.mxu0 0.0
        %712 = vmatpush1.msra.mxu0 %v680
        %713 = vmatprep.subr.mxu0 0.0
        %714 = vmatpush1.msra.mxu0 %v681
        %715 = vmatprep.subr.mxu0 0.0
        %716 = vmatpush1.msra.mxu0 %v682
        %717 = vmatprep.subr.mxu0 0.0
        %718 = vmatpush1.msra.mxu0 %v683
        %719 = vmatprep.subr.mxu0 0.0
        %720 = vmatpush1.msra.mxu0 %v684
        %721 = vmatprep.subr.mxu0 0.0
        %722 = vmatpush1.msra.mxu0 %v685
        %723 = vmatprep.subr.mxu0 0.0
        %724 = vmatpush1.msra.mxu0 %v686
        %725 = vmatprep.subr.mxu0 0.0
        %726 = vmatpush1.msra.mxu0 %v687
        %727 = vmatprep.subr.mxu0 0.0
        %728 = vmatpush1.msra.mxu0 0.0
        %729 = vmatprep.subr.mxu0 0.0
        %730 = vmatpush1.msra.mxu0 0.0
        %731 = vmatprep.subr.mxu0 0.0
        %732 = vmatpush1.msra.mxu0 0.0
        %733 = vmatprep.subr.mxu0 0.0
        %734 = vmatpush1.msra.mxu0 0.0
        %735 = vmatprep.subr.mxu0 0.0
        %736 = vmatpush1.msra.mxu0 0.0
        %737 = vmatprep.subr.mxu0 0.0
        %738 = vmatpush1.msra.mxu0 0.0
        %739 = vmatprep.subr.mxu0 0.0
        %740 = vmatpush1.msra.mxu0 0.0
        %741 = vmatprep.subr.mxu0 0.0
        %742 = vmatpush1.msra.mxu0 0.0
        %743 = vmatprep.subr.mxu0 0.0
        %744 = vmatpush1.msra.mxu0 0.0
        %745 = vmatprep.subr.mxu0 0.0
        %746 = vmatpush1.msra.mxu0 0.0
        %747 = vmatprep.subr.mxu0 0.0
        %748 = vmatpush1.msra.mxu0 0.0
        %749 = vmatprep.subr.mxu0 0.0
        %750 = vmatpush1.msra.mxu0 0.0
        %751 = vmatprep.subr.mxu0 0.0
        %752 = vmatpush1.msra.mxu0 0.0
        %753 = vmatprep.subr.mxu0 0.0
        %754 = vmatpush1.msra.mxu0 0.0
        %755 = vmatprep.subr.mxu0 0.0
        %756 = vmatpush1.msra.mxu0 0.0
        %757 = vmatprep.subr.mxu0 0.0
        %758 = vmatpush1.msra.mxu0 0.0
        %759 = vmatprep.mubr.f32.mxu0 0.0
        %760 = vmatmul.mubr.f32.gmra.mrb[0].mxu0 %v671
        %v761 = vpop.f32.mrb[0].mxu0
        %v762 = vadd.f32 %v693, %v761
        %v763 = vpop.f32.mrb[0].mxu0
        %764 = vdwg.mxu0
        %vm765 = vcmask 130048
        %766 = vst.msk [vmem:[%s353] sm:$0xff] %vm765, %v762
        %s767 = sand.u32 %s227, 1
        %s768 = scalar_lea.sflag [#allocation4], %s767
        %s769 = sand.u32 %s227, 1
        %s770 = smul.addr %s769, 8
        %s771 = scalar_lea.vmem [#allocation7], %s770
        // Predicated region
        $region65: #{_mlp_pallas.1} parent=55 // pred_check
          %p772 = pneg %p237
        $region66: #{_mlp_pallas.1} parent=55 // pred_check_branch
          %774 = sbr.rel (%p772) target = $region68
        $region67: #{_mlp_pallas.1} parent=55 // pred_region
          %s776 = ssub.s32 128, 128
          %777 = vsyncadd %s768, %s776
          %s778 = smul.addr %s25, 128
          %s779 = scalar_lea.hbm %s9, %s778
          %s781 = sshll.u32 %s771, 4
          %s782 = int_to_ptr.vmem [resolvable:$true] %s781
          %784 = dma.vmem_to_hbm [thread:$0]  %s782, 128, %s779, %s768
        $region68: #{_mlp_pallas.1} parent=55 // pred_fallthru
          _
      $region56: #{_mlp_pallas.1} parent=5 // pred_fallthru
        _
      %p785 = scmp.le.s32.totalorder 2, %s20
      // Predicated region
      $region69: #{_mlp_pallas.1} parent=5 // pred_check
        %p786 = pneg %p785
      $region70: #{_mlp_pallas.1} parent=5 // pred_check_branch
        %788 = sbr.rel (%p786) target = $region72
      $region71: #{_mlp_pallas.1} parent=5 // pred_region
        %s789 = ssub.s32 %s20, 2
        // Predicated region
        $region73: #{_mlp_pallas.1} parent=71 // pred_check
          %p790 = pneg %p243
        $region74: #{_mlp_pallas.1} parent=71 // pred_check_branch
          %792 = sbr.rel (%p790) target = $region76
        $region75: #{_mlp_pallas.1} parent=71 // pred_region
          %s793 = sand.u32 %s228, 1
          %s794 = scalar_lea.sflag [#allocation4], %s793
          %s795 = sand.u32 %s228, 1
          %s796 = smul.addr %s795, 8
          %s797 = scalar_lea.vmem [#allocation7], %s796
          %798 = dma.done %s794, 128
        $region76: #{_mlp_pallas.1} parent=71 // pred_fallthru
          _
      $region72: #{_mlp_pallas.1} parent=5 // pred_fallthru
        _
    $region6: #{_mlp_pallas.1} parent=1 // loop_footer
      %s24 = sadd.s32 1, %s20
    $region7: #{_mlp_pallas.1} parent=1 // loop_footer_branch
      %19 = sbr.rel target = $region3
    $region8: #{_mlp_pallas.1} parent=1 // loop_exit
      _
    %799 = vsyncpa [#allocation3], 1
    %s800 = scalar_lea.sflag [#allocation3], 1
    %801 = vsyncpa %s800, 1
    %802 = vsyncpa [#allocation6], 1
    %803 = vsyncpa [#allocation4], 1
    %s804 = scalar_lea.sflag [#allocation4], 1
    %805 = vsyncpa %s804, 1

</llo_original>
